<compile_context>
chip_gen: v6e
topology: v6e:2x2x1
jax: 0.10.0
libtpu: 0.0.40
codegen_flags: <defaults>
</compile_context>

<pallas_src>
import numpy as np
import jax
import jax.numpy as jnp
from jax.experimental import pallas as pl
from jax.experimental.pallas import tpu as pltpu

# Large negative (finite) additive mask.  Adding it to an already very negative
# conv value can round to -inf; harmless here because every window always has
# >= 1 valid (unmasked) row feeding the max, but keep that in mind if the
# post-processing ever changes (e.g. softmax over positions).
_MASK_NEG = -3.0e38


def _round_up(x, m):
    return ((x + m - 1) // m) * m


# ----------------------------------------------------------------------------
# Fused TextCNN kernel: conv (all window sizes, all taps) + mask + max-pool + bias
# ----------------------------------------------------------------------------
def _textcnn_kernel(x_ref, w_ref, b_ref, m_ref, o_ref):
    # x_ref: (tb, S, E)              bf16 input batch tile
    # w_ref: (win_max, E, n_out)     bf16 tap-major stacked conv weights
    #                                (zero rows for taps beyond a window's size)
    # b_ref: (1, n_out)              f32 concatenated conv biases
    # m_ref: (1, s_ext, n_out)       f32 additive validity mask (0 or -3e38)
    # o_ref: (tb, n_out)             pooled output tile
    x = x_ref[...]
    tb, s, e = x.shape
    win_max = w_ref.shape[0]
    s_ext = m_ref.shape[1]
    n_out = o_ref.shape[-1]

    # Zero-padded, 8-row-aligned extended sequence per batch row:
    #   row 0            -> top conv padding (zeros)
    #   rows [1, 1+S)    -> x
    #   rows [1+S, s_ext)-> bottom conv padding + alignment filler (all masked)
    # Built ONCE per grid step (single sublane concat), kept in f32 so the
    # per-tap sublane rotate below stays on the native 32-bit path; operands
    # are cast back to bf16 right before the MXU.
    x_ext = jnp.concatenate(
        [jnp.zeros((tb, 1, e), jnp.float32),
         x.astype(jnp.float32),
         jnp.zeros((tb, s_ext - s - 1, e), jnp.float32)],
        axis=1,
    ).reshape(tb * s_ext, e)          # free reshape: s_ext % 8 == 0

    # Per-tap accumulation: conv[b, t, :] = sum_dw x_ext[b, t+dw, :] @ w[dw].
    # The tap shift is a full-array sublane rotation (XLU); any row that picks
    # up wrapped / cross-batch data lies at t >= S+2 and is masked before the
    # max, so the rotation needs no edge handling.
    n_rows = tb * s_ext
    acc = jnp.zeros((n_rows, n_out), jnp.float32)
    for dw in range(win_max):                       # static, tiny (2..5)
        shifted = x_ext if dw == 0 else pltpu.roll(x_ext, shift=n_rows - dw, axis=0)
        acc = acc + jnp.dot(shifted.astype(jnp.bfloat16), w_ref[dw],
                            preferred_element_type=jnp.float32)

    # Knock out per-window invalid positions, max-pool over the sequence, add bias.
    conv = acc.reshape(tb, s_ext, n_out) + m_ref[...]
    pooled = jnp.max(conv, axis=1)                  # (tb, n_out)
    o_ref[...] = (pooled + b_ref[...]).astype(o_ref.dtype)


# ----------------------------------------------------------------------------
# VMEM-aware batch-tile selection
# ----------------------------------------------------------------------------
def _pick_batch_tile(b_pad, s, e, s_ext, n_out, win_max, budget_bytes=20 << 20):
    """Largest batch tile whose per-step VMEM footprint fits the budget,
    preferring >=2 grid steps (so the parallel axis shards over both TCs on v7x)."""
    def est(tb):
        x_tile   = 2 * tb * s * e * 2              # double-buffered bf16 input tile
        x_ext_b  = 2 * tb * s_ext * e * 4          # f32 padded copy + one rolled copy
        lhs_bf16 = tb * s_ext * e * 2              # bf16 MXU operand (one live)
        acc      = 2 * tb * s_ext * n_out * 4      # f32 accumulator + conv/max temps
        w        = 2 * win_max * e * n_out * 2     # resident weights (double buffered)
        m        = 2 * s_ext * n_out * 4           # resident mask
        o        = 2 * tb * n_out * 4              # output tile
        return x_tile + x_ext_b + lhs_bf16 + acc + w + m + o

    cands = [tb for tb in (512, 256, 128, 64, 32, 16, 8) if b_pad % tb == 0]
    for tb in cands:
        if b_pad // tb >= 2 and est(tb) <= budget_bytes:
            return tb, est(tb)
    for tb in cands:
        if est(tb) <= budget_bytes:
            return tb, est(tb)
    return 8, est(8)    # TODO(synk): seq-axis tiling when even tb=8 is too big


# ----------------------------------------------------------------------------
# TextCNNLayer forward (parameter packing is plain-JAX glue; one pallas_call)
# ----------------------------------------------------------------------------
def textcnn_forward(params, input_emb):
    """Matches TextCNNLayer.forward: returns conv_pool_res (fc output is dead code)."""
    B, S, E = input_emb.shape
    convs = params["convs"]
    wins = [w for (w, _, _) in convs]
    F = convs[0][1].shape[-1]
    win_max = max(wins)
    n_out = len(convs) * F
    s_pad = S + 2                                   # Conv2d padding=(1, 0)
    s_ext = _round_up(S + 1 + win_max, 8)           # padded + 8-aligned seq length

    # Tap-major stacked weights (bf16 for the MXU): w_taps[dw, :, wi*F:(wi+1)*F]
    # = conv_wi[dw] for dw < win_i, zeros otherwise.
    tap_blocks = []
    for dw in range(win_max):
        blocks = [w[dw] if dw < win else jnp.zeros((E, F), w.dtype)
                  for (win, w, _) in convs]
        tap_blocks.append(jnp.concatenate(blocks, axis=-1))
    w_taps = jnp.stack(tap_blocks, axis=0).astype(jnp.bfloat16)   # (win_max, E, n_out)
    b_cat = jnp.concatenate([b for (_, _, b) in convs], axis=-1)  # (1, n_out) f32

    # Additive validity mask (compile-time constant, resident in VMEM):
    # for window win, positions t >= s_pad - win + 1 are invalid (and so are all
    # alignment / rotation-wrap rows t >= s_pad).
    mask_np = np.zeros((1, s_ext, n_out), dtype=np.float32)
    for w_idx, win in enumerate(wins):
        t_out = s_pad - win + 1
        mask_np[0, t_out:, w_idx * F:(w_idx + 1) * F] = _MASK_NEG
    mask = jnp.asarray(mask_np)

    # bf16 input, batch padded to a multiple of 8 (padding rows sliced off below).
    x = input_emb.astype(jnp.bfloat16)
    b_pad = _round_up(max(B, 8), 8)
    if b_pad != B:
        x = jnp.pad(x, ((0, b_pad - B), (0, 0), (0, 0)))

    tb, est_bytes = _pick_batch_tile(b_pad, S, E, s_ext, n_out, win_max)
    vmem_limit = int(min(max(32 << 20, 2 * est_bytes), 64 << 20))

    out = pl.pallas_call(
        _textcnn_kernel,
        out_shape=jax.ShapeDtypeStruct((b_pad, n_out), input_emb.dtype),
        grid=(b_pad // tb,),
        in_specs=[
            pl.BlockSpec((tb, S, E), lambda i: (i, 0, 0)),             # batch-tiled x
            pl.BlockSpec((win_max, E, n_out), lambda i: (0, 0, 0)),    # resident weights
            pl.BlockSpec((1, n_out), lambda i: (0, 0)),                # resident bias
            pl.BlockSpec((1, s_ext, n_out), lambda i: (0, 0, 0)),      # resident mask
        ],
        out_specs=pl.BlockSpec((tb, n_out), lambda i: (i, 0)),
        compiler_params=pltpu.CompilerParams(
            dimension_semantics=("parallel",),
            vmem_limit_bytes=vmem_limit),
    )(x, w_taps, b_cat, mask)
    return out[:B]


# ----------------------------------------------------------------------------
# Parameter init (mirrors the PyTorch module's layers)
# ----------------------------------------------------------------------------
def init_textcnn_params(key, emb_dim, num_filters, win_size_list, output_dim):
    params = {"convs": [], "fc": None}
    for win in win_size_list:
        key, kw, kb = jax.random.split(key, 3)
        fan_in = win * emb_dim                      # Conv2d: in_channels(=1) * kh * kw
        bound = 1.0 / jnp.sqrt(fan_in)
        w = jax.random.uniform(kw, (win, emb_dim, num_filters),
                               minval=-bound, maxval=bound, dtype=jnp.float32)
        b = jax.random.uniform(kb, (1, num_filters),
                               minval=-bound, maxval=bound, dtype=jnp.float32)
        params["convs"].append((win, w, b))
    # fc exists in the module but its output is discarded by forward().
    in_feat = num_filters * len(win_size_list)
    key, kw, kb = jax.random.split(key, 3)
    bound = 1.0 / jnp.sqrt(in_feat)
    params["fc"] = (
        jax.random.uniform(kw, (in_feat, output_dim), minval=-bound, maxval=bound,
                           dtype=jnp.float32),
        jax.random.uniform(kb, (output_dim,), minval=-bound, maxval=bound,
                           dtype=jnp.float32),
    )
    return params


# ----------------------------------------------------------------------------
# Pure-JAX (f32) reference for correctness checking
# ----------------------------------------------------------------------------
def textcnn_ref(params, input_emb):
    res = []
    for (win, w, b) in params["convs"]:
        x_pad = jnp.pad(input_emb, ((0, 0), (1, 1), (0, 0)))
        t_out = x_pad.shape[1] - win + 1
        acc = 0.0
        for dw in range(win):
            acc = acc + jnp.einsum("bte,ef->btf", x_pad[:, dw:dw + t_out, :], w[dw])
        res.append(jnp.max(acc, axis=1) + b)
    return jnp.concatenate(res, axis=-1)


if __name__ == "__main__":
    B, S, E = 2, 8, 32
    num_filters = 128
    win_size_list = [2, 3]      # module default is [3]; two sizes exercise the fusion/concat
    output_dim = 128

    key = jax.random.PRNGKey(0)
    key, kx = jax.random.split(key)
    x = jax.random.normal(kx, (B, S, E), dtype=jnp.float32)

    params = init_textcnn_params(key, E, num_filters, win_size_list, output_dim)

    out = textcnn_forward(params, x)
    out = jax.block_until_ready(out)

    ref = textcnn_ref(params, x)
    assert out.shape == (B, num_filters * len(win_size_list)), out.shape
    # bf16 MXU operands with f32 accumulation -> relaxed tolerance vs f32 reference.
    assert jnp.allclose(out, ref, atol=2e-2, rtol=2e-2), "mismatch vs reference"

    print("KERNEL_OK")
</pallas_src>

<mosaic_0001>
module attributes {stable_mosaic.version = 11 : i64} {
  func.func @_textcnn_kernel(%arg0: i32, %arg1: memref<8x8x32xbf16, #tpu.memory_space<vmem>>, %arg2: memref<3x32x256xbf16, #tpu.memory_space<vmem>>, %arg3: memref<1x256xf32, #tpu.memory_space<vmem>>, %arg4: memref<1x16x256xf32, #tpu.memory_space<vmem>>, %arg5: memref<8x256xf32, #tpu.memory_space<vmem>>) attributes {dimension_semantics = [#tpu.dimension_semantics<parallel>], iteration_bounds = array<i64: 1>, scalar_prefetch = 0 : i64, scratch_operands = 0 : i64, tpu.core_type = #tpu.core_type<tc>, window_params = [{transform_indices = @transform_0, window_bounds = array<i64: 8, 8, 32>}, {pipeline_mode = #tpu.pipeline_mode<synchronous>, transform_indices = @transform_1, window_bounds = array<i64: 3, 32, 256>}, {pipeline_mode = #tpu.pipeline_mode<synchronous>, transform_indices = @transform_2, window_bounds = array<i64: 1, 256>}, {pipeline_mode = #tpu.pipeline_mode<synchronous>, transform_indices = @transform_3, window_bounds = array<i64: 1, 16, 256>}, {transform_indices = @transform_4, window_bounds = array<i64: 8, 256>}]} {
    %c0 = arith.constant 0 : index
    %c0_0 = arith.constant 0 : index
    %c0_1 = arith.constant 0 : index
    %0 = vector.load %arg1[%c0, %c0_0, %c0_1] : memref<8x8x32xbf16, #tpu.memory_space<vmem>>, vector<8x8x32xbf16>
    %cst = arith.constant 0.000000e+00 : f32
    %1 = vector.broadcast %cst : f32 to vector<8x1x32xf32>
    %2 = arith.extf %0 : vector<8x8x32xbf16> to vector<8x8x32xf32>
    %cst_2 = arith.constant 0.000000e+00 : f32
    %3 = vector.broadcast %cst_2 : f32 to vector<8x7x32xf32>
    %4 = tpu.concatenate %1, %2, %3 in 1 : vector<8x1x32xf32>, vector<8x8x32xf32>, vector<8x7x32xf32> -> vector<8x16x32xf32>
    %5 = vector.shape_cast %4 : vector<8x16x32xf32> to vector<128x32xf32>
    %cst_3 = arith.constant 0.000000e+00 : f32
    %6 = vector.broadcast %cst_3 : f32 to vector<128x256xf32>
    %7 = arith.truncf %5 : vector<128x32xf32> to vector<128x32xbf16>
    %c0_4 = arith.constant 0 : index
    %c0_5 = arith.constant 0 : index
    %c0_6 = arith.constant 0 : index
    %8 = vector.load %arg2[%c0_4, %c0_5, %c0_6] : memref<3x32x256xbf16, #tpu.memory_space<vmem>>, vector<1x32x256xbf16>
    %9 = vector.shape_cast %8 : vector<1x32x256xbf16> to vector<32x256xbf16>
    %cst_7 = arith.constant dense<0.000000e+00> : vector<128x256xf32>
    %10 = tpu.matmul %7, %9, %cst_7 {dimension_numbers = #tpu.dot_dimension_numbers<[1], [0], [0], [1], [0, 0, 1, 1], [], []>} : vector<128x32xbf16>, vector<32x256xbf16>, vector<128x256xf32> -> vector<128x256xf32>
    %11 = arith.addf %6, %10 : vector<128x256xf32>
    %c127_i32 = arith.constant 127 : i32
    %12 = tpu.dynamic_rotate %5 by %c127_i32 dim 0 : vector<128x32xf32>, i32 -> vector<128x32xf32>
    %13 = arith.truncf %12 : vector<128x32xf32> to vector<128x32xbf16>
    %c1 = arith.constant 1 : index
    %c0_8 = arith.constant 0 : index
    %c0_9 = arith.constant 0 : index
    %14 = vector.load %arg2[%c1, %c0_8, %c0_9] : memref<3x32x256xbf16, #tpu.memory_space<vmem>>, vector<1x32x256xbf16>
    %15 = vector.shape_cast %14 : vector<1x32x256xbf16> to vector<32x256xbf16>
    %cst_10 = arith.constant dense<0.000000e+00> : vector<128x256xf32>
    %16 = tpu.matmul %13, %15, %cst_10 {dimension_numbers = #tpu.dot_dimension_numbers<[1], [0], [0], [1], [0, 0, 1, 1], [], []>} : vector<128x32xbf16>, vector<32x256xbf16>, vector<128x256xf32> -> vector<128x256xf32>
    %17 = arith.addf %11, %16 : vector<128x256xf32>
    %c126_i32 = arith.constant 126 : i32
    %18 = tpu.dynamic_rotate %5 by %c126_i32 dim 0 : vector<128x32xf32>, i32 -> vector<128x32xf32>
    %19 = arith.truncf %18 : vector<128x32xf32> to vector<128x32xbf16>
    %c2 = arith.constant 2 : index
    %c0_11 = arith.constant 0 : index
    %c0_12 = arith.constant 0 : index
    %20 = vector.load %arg2[%c2, %c0_11, %c0_12] : memref<3x32x256xbf16, #tpu.memory_space<vmem>>, vector<1x32x256xbf16>
    %21 = vector.shape_cast %20 : vector<1x32x256xbf16> to vector<32x256xbf16>
    %cst_13 = arith.constant dense<0.000000e+00> : vector<128x256xf32>
    %22 = tpu.matmul %19, %21, %cst_13 {dimension_numbers = #tpu.dot_dimension_numbers<[1], [0], [0], [1], [0, 0, 1, 1], [], []>} : vector<128x32xbf16>, vector<32x256xbf16>, vector<128x256xf32> -> vector<128x256xf32>
    %23 = arith.addf %17, %22 : vector<128x256xf32>
    %24 = vector.shape_cast %23 : vector<128x256xf32> to vector<8x16x256xf32>
    %c0_14 = arith.constant 0 : index
    %c0_15 = arith.constant 0 : index
    %c0_16 = arith.constant 0 : index
    %25 = vector.load %arg4[%c0_14, %c0_15, %c0_16] : memref<1x16x256xf32, #tpu.memory_space<vmem>>, vector<1x16x256xf32>
    %26 = vector.broadcast %25 : vector<1x16x256xf32> to vector<8x16x256xf32>
    %27 = arith.addf %24, %26 : vector<8x16x256xf32>
    %cst_17 = arith.constant dense<0xFF800000> : vector<8x256xf32>
    %28 = vector.multi_reduction <maximumf>, %27, %cst_17 [1] : vector<8x16x256xf32> to vector<8x256xf32>
    %c0_18 = arith.constant 0 : index
    %c0_19 = arith.constant 0 : index
    %29 = vector.load %arg3[%c0_18, %c0_19] : memref<1x256xf32, #tpu.memory_space<vmem>>, vector<1x256xf32>
    %30 = vector.broadcast %29 : vector<1x256xf32> to vector<8x256xf32>
    %31 = arith.addf %28, %30 : vector<8x256xf32>
    %c0_20 = arith.constant 0 : index
    %c0_21 = arith.constant 0 : index
    %32 = vector.load %arg5[%c0_20, %c0_21] : memref<8x256xf32, #tpu.memory_space<vmem>>, vector<8x256xf32>
    tpu.vector_store %arg5[%c0_20, %c0_21], %31 {strides = array<i32>} : memref<8x256xf32, #tpu.memory_space<vmem>>, vector<8x256xf32>,
    return
  }
  func.func @transform_0(%arg0: i32) -> (i32, i32, i32) {
    %c0_i32 = arith.constant 0 : i32
    %c0_i32_0 = arith.constant 0 : i32
    %c0_i32_1 = arith.constant 0 : i32
    return %arg0, %c0_i32, %c0_i32_0 : i32, i32, i32
  }
  func.func @transform_1(%arg0: i32) -> (i32, i32, i32) {
    %c0_i32 = arith.constant 0 : i32
    %c0_i32_0 = arith.constant 0 : i32
    %c0_i32_1 = arith.constant 0 : i32
    %c0_i32_2 = arith.constant 0 : i32
    return %c0_i32, %c0_i32_0, %c0_i32_1 : i32, i32, i32
  }
  func.func @transform_2(%arg0: i32) -> (i32, i32) {
    %c0_i32 = arith.constant 0 : i32
    %c0_i32_0 = arith.constant 0 : i32
    %c0_i32_1 = arith.constant 0 : i32
    return %c0_i32, %c0_i32_0 : i32, i32
  }
  func.func @transform_3(%arg0: i32) -> (i32, i32, i32) {
    %c0_i32 = arith.constant 0 : i32
    %c0_i32_0 = arith.constant 0 : i32
    %c0_i32_1 = arith.constant 0 : i32
    %c0_i32_2 = arith.constant 0 : i32
    return %c0_i32, %c0_i32_0, %c0_i32_1 : i32, i32, i32
  }
  func.func @transform_4(%arg0: i32) -> (i32, i32) {
    %c0_i32 = arith.constant 0 : i32
    %c0_i32_0 = arith.constant 0 : i32
    return %arg0, %c0_i32 : i32, i32
  }
}

</mosaic_0001>

<llo_original>
// kernel: tpu_custom_call.1
$region0: #{tpu_custom_call.1}
  #allocation0 [shape = 'u32[]', space=smem, size = 0x4, offset = 0x4, fixed_abs, tag = 'smem constant byte address 0x4 - core index']
  #allocation1 [shape = 'u32[144,128]{1,0:T(1,128)}', space=vmem, size = 0x12000, scoped, tag = 'internal scratch']
  %s0 = inlined_call_operand.hbm [shape: bf16[8,8,32], index: 0, kind: input, shape index: {}]
  %s1 = inlined_call_operand.hbm [shape: bf16[3,32,256], index: 1, kind: input, shape index: {}]
  %s2 = inlined_call_operand.vmem [shape: f32[1,256], index: 2, kind: input, shape index: {}]
  %s3 = inlined_call_operand.hbm [shape: f32[1,16,256], index: 3, kind: input, shape index: {}]
  %s4 = inlined_call_operand.hbm [shape: f32[8,256], index: 4, kind: output, shape index: {}]
  %s5 = sld [smem:[#allocation0]]
  $region38: #{tpu_custom_call.1} parent=0
    _
  %s7 = ssub.s32 1, %s5
  %s8 = scalar_select 0, %s7, %s5
  $region1: #{tpu_custom_call.1} parent=0
    #allocation2 [shape = 'u8[16384]{0}', space=vmem, size = 0x4000, scoped, tag = 'input window, operand 0, single buffered']
    #allocation3 [shape = 's32[1]{0}', space=sflag, size = 0x4, scoped, tag = 'scoped memory for tpu_custom_call.1']
    #allocation4 [shape = 's32[1]{0}', space=sflag, size = 0x4, scoped, tag = 'scoped memory for tpu_custom_call.1']
    #allocation5 [shape = 'u8[49152]{0}', space=vmem, size = 0xc000, scoped, tag = 'input window, operand 1, single buffered']
    #allocation6 [shape = 's32[1]{0}', space=sflag, size = 0x4, scoped, tag = 'scoped memory for tpu_custom_call.1']
    #allocation7 [shape = 'u8[16384]{0}', space=vmem, size = 0x4000, scoped, tag = 'input window, operand 3, single buffered']
    #allocation8 [shape = 'u8[8192]{0}', space=vmem, size = 0x2000, scoped, tag = 'output window, operand 0, single buffered']
    %9 = vsyncpa [#allocation3], 0
    %10 = vsyncpa [#allocation6], 0
    %11 = vsyncpa [#allocation4], 0
    // Predicated region
    $region2: #{tpu_custom_call.1} parent=1 // pred_check
      _
    $region3: #{tpu_custom_call.1} parent=1 // pred_check_branch
      %13 = sbr.rel (0) target = $region5
    $region4: #{tpu_custom_call.1} parent=1 // pred_region
      %s15 = ssub.s32 512, 512
      %16 = vsyncadd [#allocation3], %s15
      %s17 = sshll.u32 [#allocation2], 4
      %s18 = int_to_ptr.vmem [resolvable:$true] %s17
      %23 = dma.hbm_to_vmem [thread:$0]  %s0, 512, %s18, [#allocation3], 64, 64, 4
    $region5: #{tpu_custom_call.1} parent=1 // pred_fallthru
      _
    // Predicated region
    $region6: #{tpu_custom_call.1} parent=1 // pred_check
      _
    $region7: #{tpu_custom_call.1} parent=1 // pred_check_branch
      %25 = sbr.rel (0) target = $region9
    $region8: #{tpu_custom_call.1} parent=1 // pred_region
      %s27 = ssub.s32 1536, 1536
      %28 = vsyncadd [#allocation6], %s27
      %s29 = sshll.u32 [#allocation5], 4
      %s30 = int_to_ptr.vmem [resolvable:$true] %s29
      %35 = dma.hbm_to_vmem [thread:$0]  %s1, 1536, %s30, [#allocation6], 128, 128, 8
    $region9: #{tpu_custom_call.1} parent=1 // pred_fallthru
      _
    // Predicated region
    $region10: #{tpu_custom_call.1} parent=1 // pred_check
      _
    $region11: #{tpu_custom_call.1} parent=1 // pred_check_branch
      %37 = sbr.rel (0) target = $region13
    $region12: #{tpu_custom_call.1} parent=1 // pred_region
      _
    $region13: #{tpu_custom_call.1} parent=1 // pred_fallthru
      _
    // Predicated region
    $region14: #{tpu_custom_call.1} parent=1 // pred_check
      _
    $region15: #{tpu_custom_call.1} parent=1 // pred_check_branch
      %39 = sbr.rel (0) target = $region17
    $region16: #{tpu_custom_call.1} parent=1 // pred_region
      %s41 = ssub.s32 512, 512
      %42 = vsyncadd [#allocation6], %s41
      %s43 = sshll.u32 [#allocation7], 4
      %s44 = int_to_ptr.vmem [resolvable:$true] %s43
      %49 = dma.hbm_to_vmem [thread:$0]  %s3, 512, %s44, [#allocation6], 256, 256, 16
    $region17: #{tpu_custom_call.1} parent=1 // pred_fallthru
      _
    // Predicated region
    $region18: #{tpu_custom_call.1} parent=1 // pred_check
      _
    $region19: #{tpu_custom_call.1} parent=1 // pred_check_branch
      %51 = sbr.rel (0) target = $region21
    $region20: #{tpu_custom_call.1} parent=1 // pred_region
      %52 = dma.done [#allocation3], 512
    $region21: #{tpu_custom_call.1} parent=1 // pred_fallthru
      _
    // Predicated region
    $region22: #{tpu_custom_call.1} parent=1 // pred_check
      _
    $region23: #{tpu_custom_call.1} parent=1 // pred_check_branch
      %54 = sbr.rel (0) target = $region25
    $region24: #{tpu_custom_call.1} parent=1 // pred_region
      %55 = dma.done [#allocation6], 1536
    $region25: #{tpu_custom_call.1} parent=1 // pred_fallthru
      _
    // Predicated region
    $region26: #{tpu_custom_call.1} parent=1 // pred_check
      _
    $region27: #{tpu_custom_call.1} parent=1 // pred_check_branch
      %57 = sbr.rel (0) target = $region29
    $region28: #{tpu_custom_call.1} parent=1 // pred_region
      %58 = dma.done [#allocation6], 512
    $region29: #{tpu_custom_call.1} parent=1 // pred_fallthru
      _
    %v60 = vld [vmem:[#allocation2] sm:$0xf]
    %v61 = vld [vmem:[#allocation2 + $0x4] sm:$0xf]
    %v62 = vld [vmem:[#allocation2 + $0x8] sm:$0xf]
    %v63 = vld [vmem:[#allocation2 + $0xc] sm:$0xf]
    %v64 = vld [vmem:[#allocation2 + $0x10] sm:$0xf]
    %v65 = vld [vmem:[#allocation2 + $0x14] sm:$0xf]
    %v66 = vld [vmem:[#allocation2 + $0x18] sm:$0xf]
    %v67 = vld [vmem:[#allocation2 + $0x1c] sm:$0xf]
    %v68 = vunpack.c.l.bf16 %v60
    %v69 = vunpack.c.l.bf16 %v61
    %v70 = vunpack.c.l.bf16 %v62
    %v71 = vunpack.c.l.bf16 %v63
    %v72 = vunpack.c.l.bf16 %v64
    %v73 = vunpack.c.l.bf16 %v65
    %v74 = vunpack.c.l.bf16 %v66
    %v75 = vunpack.c.l.bf16 %v67
    %v84 = vrot.slane %v68, 7
    %v85 = vrot.slane %v69, 7
    %v86 = vrot.slane %v70, 7
    %v87 = vrot.slane %v71, 7
    %v88 = vrot.slane %v72, 7
    %v89 = vrot.slane %v73, 7
    %v90 = vrot.slane %v74, 7
    %v91 = vrot.slane %v75, 7
    %vm100 = vcmask 1040384
    %v101 = vsel %vm100, 0.0, %v84
    %v102 = vsel %vm100, 0.0, %v85
    %v103 = vsel %vm100, 0.0, %v86
    %v104 = vsel %vm100, 0.0, %v87
    %v105 = vsel %vm100, 0.0, %v88
    %v106 = vsel %vm100, 0.0, %v89
    %v107 = vsel %vm100, 0.0, %v90
    %v108 = vsel %vm100, 0.0, %v91
    %v109 = vsel %vm100, %v84, 0.0
    %v110 = vsel %vm100, %v85, 0.0
    %v111 = vsel %vm100, %v86, 0.0
    %v112 = vsel %vm100, %v87, 0.0
    %v113 = vsel %vm100, %v88, 0.0
    %v114 = vsel %vm100, %v89, 0.0
    %v115 = vsel %vm100, %v90, 0.0
    %v116 = vsel %vm100, %v91, 0.0
    %v117 = vpack.c.bf16 %v109, %v101
    %v118 = vpack.c.bf16 %v110, %v102
    %v119 = vpack.c.bf16 %v111, %v103
    %v120 = vpack.c.bf16 %v112, %v104
    %v121 = vpack.c.bf16 %v113, %v105
    %v122 = vpack.c.bf16 %v114, %v106
    %v123 = vpack.c.bf16 %v115, %v107
    %v124 = vpack.c.bf16 %v116, %v108
    %v125 = vld [vmem:[#allocation5] sm:$0xff]
    %v126 = vld [vmem:[#allocation5 + $0x8] sm:$0xff]
    %v127 = vld [vmem:[#allocation5 + $0x10] sm:$0xff]
    %v128 = vld [vmem:[#allocation5 + $0x18] sm:$0xff]
    %v129 = vrot.slane %v101, 1
    %v130 = vrot.slane %v109, 1
    %v131 = vrot.slane %v102, 1
    %v132 = vrot.slane %v110, 1
    %v133 = vrot.slane %v103, 1
    %v134 = vrot.slane %v111, 1
    %v135 = vrot.slane %v104, 1
    %v136 = vrot.slane %v112, 1
    %v137 = vrot.slane %v105, 1
    %v138 = vrot.slane %v113, 1
    %v139 = vrot.slane %v106, 1
    %v140 = vrot.slane %v114, 1
    %v141 = vrot.slane %v107, 1
    %v142 = vrot.slane %v115, 1
    %v143 = vrot.slane %v108, 1
    %v144 = vrot.slane %v116, 1
    %v145 = vlaneseq
    %v146 = vshrl.u32 %v145, 7
    %vm147 = vcmp.lt.s32.totalorder %v146, 7
    %v148 = vsel %vm147, %v143, %v144
    %v149 = vsel %vm147, %v142, %v143
    %v150 = vsel %vm147, %v141, %v142
    %v151 = vsel %vm147, %v140, %v141
    %v152 = vsel %vm147, %v139, %v140
    %v153 = vsel %vm147, %v138, %v139
    %v154 = vsel %vm147, %v137, %v138
    %v155 = vsel %vm147, %v136, %v137
    %v156 = vsel %vm147, %v135, %v136
    %v157 = vsel %vm147, %v134, %v135
    %v158 = vsel %vm147, %v133, %v134
    %v159 = vsel %vm147, %v132, %v133
    %v160 = vsel %vm147, %v131, %v132
    %v161 = vsel %vm147, %v130, %v131
    %v162 = vsel %vm147, %v129, %v130
    %v163 = vsel %vm147, %v144, %v129
    %v164 = vpack.c.bf16 %v161, %v162
    %v165 = vpack.c.bf16 %v159, %v160
    %v166 = vpack.c.bf16 %v157, %v158
    %v167 = vpack.c.bf16 %v155, %v156
    %v168 = vpack.c.bf16 %v153, %v154
    %v169 = vpack.c.bf16 %v151, %v152
    %v170 = vpack.c.bf16 %v149, %v150
    %v171 = vpack.c.bf16 %v163, %v148
    %s172 = scalar_lea.vmem [#allocation5], 32
    %v173 = vld [vmem:[%s172] sm:$0xff]
    %v174 = vld [vmem:[%s172 + $0x8] sm:$0xff]
    %v175 = vld [vmem:[%s172 + $0x10] sm:$0xff]
    %v176 = vld [vmem:[%s172 + $0x18] sm:$0xff]
    %v181 = vunpack.c.l.b16 %v173
    %v182 = vunpack.c.h.b16 %v173
    %v183 = vunpack.c.l.b16 %v174
    %v184 = vunpack.c.h.b16 %v174
    %v185 = vunpack.c.l.b16 %v175
    %v186 = vunpack.c.h.b16 %v175
    %v187 = vunpack.c.l.b16 %v176
    %v188 = vunpack.c.h.b16 %v176
    %v189 = vpack.c.b16 %v183, %v181
    %v190 = vpack.c.b16 %v184, %v182
    %v191 = vpack.c.b16 %v187, %v185
    %v192 = vpack.c.b16 %v188, %v186
    %vm197 = vcmask 261120
    %v199 = vsel %vm197, %v164, 0
    %v202 = vsel %vm197, %v165, 0
    %v205 = vsel %vm197, %v166, 0
    %v208 = vsel %vm197, %v167, 0
    %v211 = vsel %vm197, %v168, 0
    %v214 = vsel %vm197, %v169, 0
    %v217 = vsel %vm197, %v170, 0
    %v220 = vsel %vm197, %v171, 0
    %222 = vmatprep.subr.bf16.mxu0 0
    %223 = vmatpush1.bf16.msra.mxu0 0
    %224 = vmatprep.subr.bf16.mxu0 0
    %225 = vmatpush1.bf16.msra.mxu0 0
    %226 = vmatprep.subr.bf16.mxu0 0
    %227 = vmatpush1.bf16.msra.mxu0 0
    %228 = vmatprep.subr.bf16.mxu0 0
    %229 = vmatpush1.bf16.msra.mxu0 0
    %230 = vmatprep.subr.bf16.mxu0 0
    %231 = vmatpush1.bf16.msra.mxu0 0
    %232 = vmatprep.subr.bf16.mxu0 0
    %233 = vmatpush1.bf16.msra.mxu0 0
    %234 = vmatprep.subr.bf16.mxu0 %v192
    %235 = vmatpush1.bf16.msra.mxu0 %v191
    %236 = vmatprep.subr.bf16.mxu0 %v190
    %237 = vmatpush1.bf16.msra.mxu0 %v189
    %238 = vmatprep.subr.bf16.mxu0 0
    %239 = vmatpush2.bf16.msra.mxu0 0
    %240 = vmatprep.subr.bf16.mxu0 0
    %241 = vmatpush2.bf16.msra.mxu0 0
    %242 = vmatprep.subr.bf16.mxu0 0
    %243 = vmatpush2.bf16.msra.mxu0 0
    %244 = vmatprep.subr.bf16.mxu0 0
    %245 = vmatpush2.bf16.msra.mxu0 0
    %246 = vmatprep.subr.bf16.mxu0 0
    %247 = vmatpush2.bf16.msra.mxu0 0
    %248 = vmatprep.subr.bf16.mxu0 0
    %249 = vmatpush2.bf16.msra.mxu0 0
    %250 = vmatprep.subr.bf16.mxu0 0
    %251 = vmatpush2.bf16.msra.mxu0 0
    %252 = vmatprep.subr.bf16.mxu0 0
    %253 = vmatpush2.bf16.msra.mxu0 0
    %254 = vmatprep.mubr.bf16.mxu0 0
    %255 = vmatmul.mubr.bf16.gmra.mxu0 %v199
    %v256 = vpop.f32.mrf.mxu0
    %v257 = vadd.f32 0.0, %v256
    %v258 = vpop.f32.mrf.mxu0
    %v259 = vadd.f32 0.0, %v258
    %v260 = vpop.f32.mrf.mxu0
    %v261 = vadd.f32 0.0, %v260
    %v262 = vpop.f32.mrf.mxu0
    %v263 = vadd.f32 0.0, %v262
    %264 = vmatprep.mubr.bf16.mxu0 0
    %265 = vmatmul.mubr.bf16.gmra.mxu0 %v202
    %v266 = vpop.f32.mrf.mxu0
    %v267 = vadd.f32 0.0, %v266
    %v268 = vpop.f32.mrf.mxu0
    %v269 = vadd.f32 0.0, %v268
    %v270 = vpop.f32.mrf.mxu0
    %v271 = vadd.f32 0.0, %v270
    %v272 = vpop.f32.mrf.mxu0
    %v273 = vadd.f32 0.0, %v272
    %274 = vmatprep.mubr.bf16.mxu0 0
    %275 = vmatmul.mubr.bf16.gmra.mxu0 %v205
    %v276 = vpop.f32.mrf.mxu0
    %v277 = vadd.f32 0.0, %v276
    %v278 = vpop.f32.mrf.mxu0
    %v279 = vadd.f32 0.0, %v278
    %v280 = vpop.f32.mrf.mxu0
    %v281 = vadd.f32 0.0, %v280
    %v282 = vpop.f32.mrf.mxu0
    %v283 = vadd.f32 0.0, %v282
    %284 = vmatprep.mubr.bf16.mxu0 0
    %285 = vmatmul.mubr.bf16.gmra.mxu0 %v208
    %v286 = vpop.f32.mrf.mxu0
    %v287 = vadd.f32 0.0, %v286
    %v288 = vpop.f32.mrf.mxu0
    %v289 = vadd.f32 0.0, %v288
    %v290 = vpop.f32.mrf.mxu0
    %v291 = vadd.f32 0.0, %v290
    %v292 = vpop.f32.mrf.mxu0
    %v293 = vadd.f32 0.0, %v292
    %294 = vmatprep.mubr.bf16.mxu0 0
    %295 = vmatmul.mubr.bf16.gmra.mxu0 %v211
    %v296 = vpop.f32.mrf.mxu0
    %v297 = vadd.f32 0.0, %v296
    %v298 = vpop.f32.mrf.mxu0
    %v299 = vadd.f32 0.0, %v298
    %v300 = vpop.f32.mrf.mxu0
    %v301 = vadd.f32 0.0, %v300
    %v302 = vpop.f32.mrf.mxu0
    %v303 = vadd.f32 0.0, %v302
    %304 = vmatprep.mubr.bf16.mxu0 0
    %305 = vmatmul.mubr.bf16.gmra.mxu0 %v214
    %v306 = vpop.f32.mrf.mxu0
    %v307 = vadd.f32 0.0, %v306
    %v308 = vpop.f32.mrf.mxu0
    %v309 = vadd.f32 0.0, %v308
    %v310 = vpop.f32.mrf.mxu0
    %v311 = vadd.f32 0.0, %v310
    %v312 = vpop.f32.mrf.mxu0
    %v313 = vadd.f32 0.0, %v312
    %314 = vmatprep.mubr.bf16.mxu0 0
    %315 = vmatmul.mubr.bf16.gmra.mxu0 %v217
    %v316 = vpop.f32.mrf.mxu0
    %v317 = vadd.f32 0.0, %v316
    %v318 = vpop.f32.mrf.mxu0
    %v319 = vadd.f32 0.0, %v318
    %v320 = vpop.f32.mrf.mxu0
    %v321 = vadd.f32 0.0, %v320
    %v322 = vpop.f32.mrf.mxu0
    %v323 = vadd.f32 0.0, %v322
    %324 = vmatprep.mubr.bf16.mxu0 0
    %325 = vmatmul.mubr.bf16.gmra.mxu0 %v220
    %v326 = vpop.f32.mrf.mxu0
    %v327 = vadd.f32 0.0, %v326
    %v328 = vpop.f32.mrf.mxu0
    %v329 = vadd.f32 0.0, %v328
    %v330 = vpop.f32.mrf.mxu0
    %v331 = vadd.f32 0.0, %v330
    %v332 = vpop.f32.mrf.mxu0
    %v333 = vadd.f32 0.0, %v332
    %334 = vdwg.mxu0
    %v339 = vunpack.c.l.b16 %v125
    %v340 = vunpack.c.h.b16 %v125
    %v341 = vunpack.c.l.b16 %v126
    %v342 = vunpack.c.h.b16 %v126
    %v343 = vunpack.c.l.b16 %v127
    %v344 = vunpack.c.h.b16 %v127
    %v345 = vunpack.c.l.b16 %v128
    %v346 = vunpack.c.h.b16 %v128
    %v347 = vpack.c.b16 %v341, %v339
    %v348 = vpack.c.b16 %v342, %v340
    %v349 = vpack.c.b16 %v345, %v343
    %v350 = vpack.c.b16 %v346, %v344
    %v356 = vsel %vm197, %v117, 0
    %v359 = vsel %vm197, %v118, 0
    %v362 = vsel %vm197, %v119, 0
    %v365 = vsel %vm197, %v120, 0
    %v368 = vsel %vm197, %v121, 0
    %v371 = vsel %vm197, %v122, 0
    %v374 = vsel %vm197, %v123, 0
    %v377 = vsel %vm197, %v124, 0
    %379 = vmatprep.subr.bf16.mxu0 0
    %380 = vmatpush1.bf16.msra.mxu0 0
    %381 = vmatprep.subr.bf16.mxu0 0
    %382 = vmatpush1.bf16.msra.mxu0 0
    %383 = vmatprep.subr.bf16.mxu0 0
    %384 = vmatpush1.bf16.msra.mxu0 0
    %385 = vmatprep.subr.bf16.mxu0 0
    %386 = vmatpush1.bf16.msra.mxu0 0
    %387 = vmatprep.subr.bf16.mxu0 0
    %388 = vmatpush1.bf16.msra.mxu0 0
    %389 = vmatprep.subr.bf16.mxu0 0
    %390 = vmatpush1.bf16.msra.mxu0 0
    %391 = vmatprep.subr.bf16.mxu0 %v350
    %392 = vmatpush1.bf16.msra.mxu0 %v349
    %393 = vmatprep.subr.bf16.mxu0 %v348
    %394 = vmatpush1.bf16.msra.mxu0 %v347
    %395 = vmatprep.subr.bf16.mxu0 0
    %396 = vmatpush2.bf16.msra.mxu0 0
    %397 = vmatprep.subr.bf16.mxu0 0
    %398 = vmatpush2.bf16.msra.mxu0 0
    %399 = vmatprep.subr.bf16.mxu0 0
    %400 = vmatpush2.bf16.msra.mxu0 0
    %401 = vmatprep.subr.bf16.mxu0 0
    %402 = vmatpush2.bf16.msra.mxu0 0
    %403 = vmatprep.subr.bf16.mxu0 0
    %404 = vmatpush2.bf16.msra.mxu0 0
    %405 = vmatprep.subr.bf16.mxu0 0
    %406 = vmatpush2.bf16.msra.mxu0 0
    %407 = vmatprep.subr.bf16.mxu0 0
    %408 = vmatpush2.bf16.msra.mxu0 0
    %409 = vmatprep.subr.bf16.mxu0 0
    %410 = vmatpush2.bf16.msra.mxu0 0
    %411 = vmatprep.mubr.bf16.mxu0 0
    %412 = vmatmul.mubr.bf16.gmra.mxu0 %v356
    %v413 = vpop.f32.mrf.mxu0
    %v414 = vadd.f32 %v257, %v413
    %v415 = vpop.f32.mrf.mxu0
    %v416 = vadd.f32 %v259, %v415
    %v417 = vpop.f32.mrf.mxu0
    %v418 = vadd.f32 %v261, %v417
    %v419 = vpop.f32.mrf.mxu0
    %v420 = vadd.f32 %v263, %v419
    %421 = vmatprep.mubr.bf16.mxu0 0
    %422 = vmatmul.mubr.bf16.gmra.mxu0 %v359
    %v423 = vpop.f32.mrf.mxu0
    %v424 = vadd.f32 %v267, %v423
    %v425 = vpop.f32.mrf.mxu0
    %v426 = vadd.f32 %v269, %v425
    %v427 = vpop.f32.mrf.mxu0
    %v428 = vadd.f32 %v271, %v427
    %v429 = vpop.f32.mrf.mxu0
    %v430 = vadd.f32 %v273, %v429
    %431 = vmatprep.mubr.bf16.mxu0 0
    %432 = vmatmul.mubr.bf16.gmra.mxu0 %v362
    %v433 = vpop.f32.mrf.mxu0
    %v434 = vadd.f32 %v277, %v433
    %v435 = vpop.f32.mrf.mxu0
    %v436 = vadd.f32 %v279, %v435
    %v437 = vpop.f32.mrf.mxu0
    %v438 = vadd.f32 %v281, %v437
    %v439 = vpop.f32.mrf.mxu0
    %v440 = vadd.f32 %v283, %v439
    %441 = vmatprep.mubr.bf16.mxu0 0
    %442 = vmatmul.mubr.bf16.gmra.mxu0 %v365
    %v443 = vpop.f32.mrf.mxu0
    %v444 = vadd.f32 %v287, %v443
    %v445 = vpop.f32.mrf.mxu0
    %v446 = vadd.f32 %v289, %v445
    %v447 = vpop.f32.mrf.mxu0
    %v448 = vadd.f32 %v291, %v447
    %v449 = vpop.f32.mrf.mxu0
    %v450 = vadd.f32 %v293, %v449
    %451 = vmatprep.mubr.bf16.mxu0 0
    %452 = vmatmul.mubr.bf16.gmra.mxu0 %v368
    %v453 = vpop.f32.mrf.mxu0
    %v454 = vadd.f32 %v297, %v453
    %v455 = vpop.f32.mrf.mxu0
    %v456 = vadd.f32 %v299, %v455
    %v457 = vpop.f32.mrf.mxu0
    %v458 = vadd.f32 %v301, %v457
    %v459 = vpop.f32.mrf.mxu0
    %v460 = vadd.f32 %v303, %v459
    %461 = vmatprep.mubr.bf16.mxu0 0
    %462 = vmatmul.mubr.bf16.gmra.mxu0 %v371
    %v463 = vpop.f32.mrf.mxu0
    %v464 = vadd.f32 %v307, %v463
    %v465 = vpop.f32.mrf.mxu0
    %v466 = vadd.f32 %v309, %v465
    %v467 = vpop.f32.mrf.mxu0
    %v468 = vadd.f32 %v311, %v467
    %v469 = vpop.f32.mrf.mxu0
    %v470 = vadd.f32 %v313, %v469
    %471 = vmatprep.mubr.bf16.mxu0 0
    %472 = vmatmul.mubr.bf16.gmra.mxu0 %v374
    %v473 = vpop.f32.mrf.mxu0
    %v474 = vadd.f32 %v317, %v473
    %v475 = vpop.f32.mrf.mxu0
    %v476 = vadd.f32 %v319, %v475
    %v477 = vpop.f32.mrf.mxu0
    %v478 = vadd.f32 %v321, %v477
    %v479 = vpop.f32.mrf.mxu0
    %v480 = vadd.f32 %v323, %v479
    %481 = vmatprep.mubr.bf16.mxu0 0
    %482 = vmatmul.mubr.bf16.gmra.mxu0 %v377
    %v483 = vpop.f32.mrf.mxu0
    %v484 = vadd.f32 %v327, %v483
    %v485 = vpop.f32.mrf.mxu0
    %v486 = vadd.f32 %v329, %v485
    %v487 = vpop.f32.mrf.mxu0
    %v488 = vadd.f32 %v331, %v487
    %v489 = vpop.f32.mrf.mxu0
    %v490 = vadd.f32 %v333, %v489
    %491 = vdwg.mxu0
    %v492 = vrot.slane %v101, 2
    %v493 = vrot.slane %v109, 2
    %v494 = vrot.slane %v102, 2
    %v495 = vrot.slane %v110, 2
    %v496 = vrot.slane %v103, 2
    %v497 = vrot.slane %v111, 2
    %v498 = vrot.slane %v104, 2
    %v499 = vrot.slane %v112, 2
    %v500 = vrot.slane %v105, 2
    %v501 = vrot.slane %v113, 2
    %v502 = vrot.slane %v106, 2
    %v503 = vrot.slane %v114, 2
    %v504 = vrot.slane %v107, 2
    %v505 = vrot.slane %v115, 2
    %v506 = vrot.slane %v108, 2
    %v507 = vrot.slane %v116, 2
    %vm508 = vcmp.lt.s32.totalorder %v146, 6
    %v509 = vsel %vm508, %v506, %v507
    %v510 = vsel %vm508, %v505, %v506
    %v511 = vsel %vm508, %v504, %v505
    %v512 = vsel %vm508, %v503, %v504
    %v513 = vsel %vm508, %v502, %v503
    %v514 = vsel %vm508, %v501, %v502
    %v515 = vsel %vm508, %v500, %v501
    %v516 = vsel %vm508, %v499, %v500
    %v517 = vsel %vm508, %v498, %v499
    %v518 = vsel %vm508, %v497, %v498
    %v519 = vsel %vm508, %v496, %v497
    %v520 = vsel %vm508, %v495, %v496
    %v521 = vsel %vm508, %v494, %v495
    %v522 = vsel %vm508, %v493, %v494
    %v523 = vsel %vm508, %v492, %v493
    %v524 = vsel %vm508, %v507, %v492
    %v525 = vpack.c.bf16 %v522, %v523
    %v526 = vpack.c.bf16 %v520, %v521
    %v527 = vpack.c.bf16 %v518, %v519
    %v528 = vpack.c.bf16 %v516, %v517
    %v529 = vpack.c.bf16 %v514, %v515
    %v530 = vpack.c.bf16 %v512, %v513
    %v531 = vpack.c.bf16 %v510, %v511
    %v532 = vpack.c.bf16 %v524, %v509
    %s533 = scalar_lea.vmem [#allocation5], 64
    %v534 = vld [vmem:[%s533] sm:$0xff]
    %v535 = vld [vmem:[%s533 + $0x8] sm:$0xff]
    %v536 = vld [vmem:[%s533 + $0x10] sm:$0xff]
    %v537 = vld [vmem:[%s533 + $0x18] sm:$0xff]
    %v542 = vunpack.c.l.b16 %v534
    %v543 = vunpack.c.h.b16 %v534
    %v544 = vunpack.c.l.b16 %v535
    %v545 = vunpack.c.h.b16 %v535
    %v546 = vunpack.c.l.b16 %v536
    %v547 = vunpack.c.h.b16 %v536
    %v548 = vunpack.c.l.b16 %v537
    %v549 = vunpack.c.h.b16 %v537
    %v550 = vpack.c.b16 %v544, %v542
    %v551 = vpack.c.b16 %v545, %v543
    %v552 = vpack.c.b16 %v548, %v546
    %v553 = vpack.c.b16 %v549, %v547
    %v559 = vsel %vm197, %v525, 0
    %v562 = vsel %vm197, %v526, 0
    %v565 = vsel %vm197, %v527, 0
    %v568 = vsel %vm197, %v528, 0
    %v571 = vsel %vm197, %v529, 0
    %v574 = vsel %vm197, %v530, 0
    %v577 = vsel %vm197, %v531, 0
    %v580 = vsel %vm197, %v532, 0
    %582 = vmatprep.subr.bf16.mxu0 0
    %583 = vmatpush1.bf16.msra.mxu0 0
    %584 = vmatprep.subr.bf16.mxu0 0
    %585 = vmatpush1.bf16.msra.mxu0 0
    %586 = vmatprep.subr.bf16.mxu0 0
    %587 = vmatpush1.bf16.msra.mxu0 0
    %588 = vmatprep.subr.bf16.mxu0 0
    %589 = vmatpush1.bf16.msra.mxu0 0
    %590 = vmatprep.subr.bf16.mxu0 0
    %591 = vmatpush1.bf16.msra.mxu0 0
    %592 = vmatprep.subr.bf16.mxu0 0
    %593 = vmatpush1.bf16.msra.mxu0 0
    %594 = vmatprep.subr.bf16.mxu0 %v553
    %595 = vmatpush1.bf16.msra.mxu0 %v552
    %596 = vmatprep.subr.bf16.mxu0 %v551
    %597 = vmatpush1.bf16.msra.mxu0 %v550
    %598 = vmatprep.subr.bf16.mxu0 0
    %599 = vmatpush2.bf16.msra.mxu0 0
    %600 = vmatprep.subr.bf16.mxu0 0
    %601 = vmatpush2.bf16.msra.mxu0 0
    %602 = vmatprep.subr.bf16.mxu0 0
    %603 = vmatpush2.bf16.msra.mxu0 0
    %604 = vmatprep.subr.bf16.mxu0 0
    %605 = vmatpush2.bf16.msra.mxu0 0
    %606 = vmatprep.subr.bf16.mxu0 0
    %607 = vmatpush2.bf16.msra.mxu0 0
    %608 = vmatprep.subr.bf16.mxu0 0
    %609 = vmatpush2.bf16.msra.mxu0 0
    %610 = vmatprep.subr.bf16.mxu0 0
    %611 = vmatpush2.bf16.msra.mxu0 0
    %612 = vmatprep.subr.bf16.mxu0 0
    %613 = vmatpush2.bf16.msra.mxu0 0
    %614 = vmatprep.mubr.bf16.mxu0 0
    %615 = vmatmul.mubr.bf16.gmra.mxu0 %v559
    %v616 = vpop.f32.mrf.mxu0
    %v617 = vadd.f32 0.0, %v616
    %v618 = vpop.f32.mrf.mxu0
    %v619 = vadd.f32 0.0, %v618
    %v620 = vpop.f32.mrf.mxu0
    %v621 = vadd.f32 0.0, %v620
    %v622 = vpop.f32.mrf.mxu0
    %v623 = vadd.f32 0.0, %v622
    %624 = vmatprep.mubr.bf16.mxu0 0
    %625 = vmatmul.mubr.bf16.gmra.mxu0 %v562
    %v626 = vpop.f32.mrf.mxu0
    %v627 = vadd.f32 0.0, %v626
    %v628 = vpop.f32.mrf.mxu0
    %v629 = vadd.f32 0.0, %v628
    %v630 = vpop.f32.mrf.mxu0
    %v631 = vadd.f32 0.0, %v630
    %v632 = vpop.f32.mrf.mxu0
    %v633 = vadd.f32 0.0, %v632
    %634 = vmatprep.mubr.bf16.mxu0 0
    %635 = vmatmul.mubr.bf16.gmra.mxu0 %v565
    %v636 = vpop.f32.mrf.mxu0
    %v637 = vadd.f32 0.0, %v636
    %v638 = vpop.f32.mrf.mxu0
    %v639 = vadd.f32 0.0, %v638
    %v640 = vpop.f32.mrf.mxu0
    %v641 = vadd.f32 0.0, %v640
    %v642 = vpop.f32.mrf.mxu0
    %v643 = vadd.f32 0.0, %v642
    %644 = vmatprep.mubr.bf16.mxu0 0
    %645 = vmatmul.mubr.bf16.gmra.mxu0 %v568
    %v646 = vpop.f32.mrf.mxu0
    %v647 = vadd.f32 0.0, %v646
    %v648 = vpop.f32.mrf.mxu0
    %v649 = vadd.f32 0.0, %v648
    %v650 = vpop.f32.mrf.mxu0
    %v651 = vadd.f32 0.0, %v650
    %v652 = vpop.f32.mrf.mxu0
    %v653 = vadd.f32 0.0, %v652
    %654 = vmatprep.mubr.bf16.mxu0 0
    %655 = vmatmul.mubr.bf16.gmra.mxu0 %v571
    %v656 = vpop.f32.mrf.mxu0
    %v657 = vadd.f32 0.0, %v656
    %v658 = vpop.f32.mrf.mxu0
    %v659 = vadd.f32 0.0, %v658
    %v660 = vpop.f32.mrf.mxu0
    %v661 = vadd.f32 0.0, %v660
    %v662 = vpop.f32.mrf.mxu0
    %v663 = vadd.f32 0.0, %v662
    %664 = vmatprep.mubr.bf16.mxu0 0
    %665 = vmatmul.mubr.bf16.gmra.mxu0 %v574
    %v666 = vpop.f32.mrf.mxu0
    %v667 = vadd.f32 0.0, %v666
    %v668 = vpop.f32.mrf.mxu0
    %v669 = vadd.f32 0.0, %v668
    %v670 = vpop.f32.mrf.mxu0
    %v671 = vadd.f32 0.0, %v670
    %v672 = vpop.f32.mrf.mxu0
    %v673 = vadd.f32 0.0, %v672
    %674 = vmatprep.mubr.bf16.mxu0 0
    %675 = vmatmul.mubr.bf16.gmra.mxu0 %v577
    %v676 = vpop.f32.mrf.mxu0
    %v677 = vadd.f32 0.0, %v676
    %v678 = vpop.f32.mrf.mxu0
    %v679 = vadd.f32 0.0, %v678
    %v680 = vpop.f32.mrf.mxu0
    %v681 = vadd.f32 0.0, %v680
    %v682 = vpop.f32.mrf.mxu0
    %v683 = vadd.f32 0.0, %v682
    %684 = vmatprep.mubr.bf16.mxu0 0
    %685 = vmatmul.mubr.bf16.gmra.mxu0 %v580
    %v686 = vpop.f32.mrf.mxu0
    %v687 = vadd.f32 0.0, %v686
    %v688 = vpop.f32.mrf.mxu0
    %v689 = vadd.f32 0.0, %v688
    %v690 = vpop.f32.mrf.mxu0
    %v691 = vadd.f32 0.0, %v690
    %v692 = vpop.f32.mrf.mxu0
    %v693 = vadd.f32 0.0, %v692
    %694 = vdwg.mxu0
    %v695 = vadd.f32 %v414, %v617
    %v696 = vadd.f32 %v416, %v619
    %v697 = vadd.f32 %v418, %v621
    %v698 = vadd.f32 %v420, %v623
    %v699 = vadd.f32 %v424, %v627
    %v700 = vadd.f32 %v426, %v629
    %v701 = vadd.f32 %v428, %v631
    %v702 = vadd.f32 %v430, %v633
    %v703 = vadd.f32 %v434, %v637
    %v704 = vadd.f32 %v436, %v639
    %v705 = vadd.f32 %v438, %v641
    %v706 = vadd.f32 %v440, %v643
    %v707 = vadd.f32 %v444, %v647
    %v708 = vadd.f32 %v446, %v649
    %v709 = vadd.f32 %v448, %v651
    %v710 = vadd.f32 %v450, %v653
    %v711 = vadd.f32 %v454, %v657
    %v712 = vadd.f32 %v456, %v659
    %v713 = vadd.f32 %v458, %v661
    %v714 = vadd.f32 %v460, %v663
    %v715 = vadd.f32 %v464, %v667
    %v716 = vadd.f32 %v466, %v669
    %v717 = vadd.f32 %v468, %v671
    %v718 = vadd.f32 %v470, %v673
    %v719 = vadd.f32 %v474, %v677
    %v720 = vadd.f32 %v476, %v679
    %v721 = vadd.f32 %v478, %v681
    %v722 = vadd.f32 %v480, %v683
    %v723 = vadd.f32 %v484, %v687
    %v724 = vadd.f32 %v486, %v689
    %v725 = vadd.f32 %v488, %v691
    %v726 = vadd.f32 %v490, %v693
    %v727 = vld [vmem:[#allocation7] sm:$0xff]
    %v728 = vld [vmem:[#allocation7 + $0x8] sm:$0xff]
    %v729 = vld [vmem:[#allocation7 + $0x10] sm:$0xff]
    %v730 = vld [vmem:[#allocation7 + $0x18] sm:$0xff]
    %v731 = vadd.f32 %v695, %v727
    %v732 = vadd.f32 %v696, %v728
    %v733 = vadd.f32 %v697, %v729
    %v734 = vadd.f32 %v698, %v730
    %v735 = vadd.f32 %v699, %v727
    %v736 = vadd.f32 %v700, %v728
    %v737 = vadd.f32 %v701, %v729
    %v738 = vadd.f32 %v702, %v730
    %v739 = vadd.f32 %v703, %v727
    %v740 = vadd.f32 %v704, %v728
    %v741 = vadd.f32 %v705, %v729
    %v742 = vadd.f32 %v706, %v730
    %v743 = vadd.f32 %v707, %v727
    %v744 = vadd.f32 %v708, %v728
    %v745 = vadd.f32 %v709, %v729
    %v746 = vadd.f32 %v710, %v730
    %v747 = vadd.f32 %v711, %v727
    %v748 = vadd.f32 %v712, %v728
    %v749 = vadd.f32 %v713, %v729
    %v750 = vadd.f32 %v714, %v730
    %v751 = vadd.f32 %v715, %v727
    %v752 = vadd.f32 %v716, %v728
    %v753 = vadd.f32 %v717, %v729
    %v754 = vadd.f32 %v718, %v730
    %v755 = vadd.f32 %v719, %v727
    %v756 = vadd.f32 %v720, %v728
    %v757 = vadd.f32 %v721, %v729
    %v758 = vadd.f32 %v722, %v730
    %v759 = vadd.f32 %v723, %v727
    %v760 = vadd.f32 %v724, %v728
    %v761 = vadd.f32 %v725, %v729
    %v762 = vadd.f32 %v726, %v730
    %v763 = vmax.f32 %v731, %v733
    %v764 = vrot.slane %v763, 4
    %v765 = vmax.f32 %v763, %v764
    %v766 = vrot.slane %v765, 2
    %v767 = vmax.f32 %v765, %v766
    %v768 = vrot.slane %v767, 1
    %v769 = vmax.f32 %v767, %v768
    %v770 = vmax.f32 %v732, %v734
    %v771 = vrot.slane %v770, 4
    %v772 = vmax.f32 %v770, %v771
    %v773 = vrot.slane %v772, 2
    %v774 = vmax.f32 %v772, %v773
    %v775 = vrot.slane %v774, 1
    %v776 = vmax.f32 %v774, %v775
    %v777 = vmax.f32 %v735, %v737
    %v778 = vrot.slane %v777, 4
    %v779 = vmax.f32 %v777, %v778
    %v780 = vrot.slane %v779, 2
    %v781 = vmax.f32 %v779, %v780
    %v782 = vrot.slane %v781, 1
    %v783 = vmax.f32 %v781, %v782
    %v784 = vmax.f32 %v736, %v738
    %v785 = vrot.slane %v784, 4
    %v786 = vmax.f32 %v784, %v785
    %v787 = vrot.slane %v786, 2
    %v788 = vmax.f32 %v786, %v787
    %v789 = vrot.slane %v788, 1
    %v790 = vmax.f32 %v788, %v789
    %v791 = vmax.f32 %v739, %v741
    %v792 = vrot.slane %v791, 4
    %v793 = vmax.f32 %v791, %v792
    %v794 = vrot.slane %v793, 2
    %v795 = vmax.f32 %v793, %v794
    %v796 = vrot.slane %v795, 1
    %v797 = vmax.f32 %v795, %v796
    %v798 = vmax.f32 %v740, %v742
    %v799 = vrot.slane %v798, 4
    %v800 = vmax.f32 %v798, %v799
    %v801 = vrot.slane %v800, 2
    %v802 = vmax.f32 %v800, %v801
    %v803 = vrot.slane %v802, 1
    %v804 = vmax.f32 %v802, %v803
    %v805 = vmax.f32 %v743, %v745
    %v806 = vrot.slane %v805, 4
    %v807 = vmax.f32 %v805, %v806
    %v808 = vrot.slane %v807, 2
    %v809 = vmax.f32 %v807, %v808
    %v810 = vrot.slane %v809, 1
    %v811 = vmax.f32 %v809, %v810
    %v812 = vmax.f32 %v744, %v746
    %v813 = vrot.slane %v812, 4
    %v814 = vmax.f32 %v812, %v813
    %v815 = vrot.slane %v814, 2
    %v816 = vmax.f32 %v814, %v815
    %v817 = vrot.slane %v816, 1
    %v818 = vmax.f32 %v816, %v817
    %v819 = vmax.f32 %v747, %v749
    %v820 = vrot.slane %v819, 4
    %v821 = vmax.f32 %v819, %v820
    %v822 = vrot.slane %v821, 2
    %v823 = vmax.f32 %v821, %v822
    %v824 = vrot.slane %v823, 1
    %v825 = vmax.f32 %v823, %v824
    %v826 = vmax.f32 %v748, %v750
    %v827 = vrot.slane %v826, 4
    %v828 = vmax.f32 %v826, %v827
    %v829 = vrot.slane %v828, 2
    %v830 = vmax.f32 %v828, %v829
    %v831 = vrot.slane %v830, 1
    %v832 = vmax.f32 %v830, %v831
    %v833 = vmax.f32 %v751, %v753
    %v834 = vrot.slane %v833, 4
    %v835 = vmax.f32 %v833, %v834
    %v836 = vrot.slane %v835, 2
    %v837 = vmax.f32 %v835, %v836
    %v838 = vrot.slane %v837, 1
    %v839 = vmax.f32 %v837, %v838
    %v840 = vmax.f32 %v752, %v754
    %v841 = vrot.slane %v840, 4
    %v842 = vmax.f32 %v840, %v841
    %v843 = vrot.slane %v842, 2
    %v844 = vmax.f32 %v842, %v843
    %v845 = vrot.slane %v844, 1
    %v846 = vmax.f32 %v844, %v845
    %v847 = vmax.f32 %v755, %v757
    %v848 = vrot.slane %v847, 4
    %v849 = vmax.f32 %v847, %v848
    %v850 = vrot.slane %v849, 2
    %v851 = vmax.f32 %v849, %v850
    %v852 = vrot.slane %v851, 1
    %v853 = vmax.f32 %v851, %v852
    %v854 = vmax.f32 %v756, %v758
    %v855 = vrot.slane %v854, 4
    %v856 = vmax.f32 %v854, %v855
    %v857 = vrot.slane %v856, 2
    %v858 = vmax.f32 %v856, %v857
    %v859 = vrot.slane %v858, 1
    %v860 = vmax.f32 %v858, %v859
    %v861 = vmax.f32 %v759, %v761
    %v862 = vrot.slane %v861, 4
    %v863 = vmax.f32 %v861, %v862
    %v864 = vrot.slane %v863, 2
    %v865 = vmax.f32 %v863, %v864
    %v866 = vrot.slane %v865, 1
    %v867 = vmax.f32 %v865, %v866
    %v868 = vmax.f32 %v760, %v762
    %v869 = vrot.slane %v868, 4
    %v870 = vmax.f32 %v868, %v869
    %v871 = vrot.slane %v870, 2
    %v872 = vmax.f32 %v870, %v871
    %v873 = vrot.slane %v872, 1
    %v874 = vmax.f32 %v872, %v873
    %v875 = vld [vmem:[%s2] sm:$0x3]
    %v877 = vlaneseq
    %v878 = vshrl.u32 %v877, 7
    %v879 = vsub.s32 0, %v878
    %v880 = vrot.slane %v875, %v879
    %v881 = vlaneseq
    %v882 = vshrl.u32 %v881, 7
    %v883 = vsub.s32 1, %v882
    %v884 = vrot.slane %v875, %v883
    %v887 = vadd.f32 %v769, %v880
    %v888 = vadd.f32 %v776, %v884
    %v889 = vadd.f32 %v783, %v880
    %v890 = vadd.f32 %v790, %v884
    %v891 = vadd.f32 %v797, %v880
    %v892 = vadd.f32 %v804, %v884
    %v893 = vadd.f32 %v811, %v880
    %v894 = vadd.f32 %v818, %v884
    %v895 = vadd.f32 %v825, %v880
    %v896 = vadd.f32 %v832, %v884
    %v897 = vadd.f32 %v839, %v880
    %v898 = vadd.f32 %v846, %v884
    %v899 = vadd.f32 %v853, %v880
    %v900 = vadd.f32 %v860, %v884
    %v901 = vadd.f32 %v867, %v880
    %v902 = vadd.f32 %v874, %v884
    %v919 = vrot.slane %v889, 7
    %vm920 = vcmask 1041409
    %v921 = vsel %vm920, %v919, %v887
    %v922 = vrot.slane %v891, 6
    %vm923 = vcmask 1042434
    %v924 = vsel %vm923, %v922, %v921
    %v925 = vrot.slane %v893, 5
    %vm926 = vcmask 1043459
    %v927 = vsel %vm926, %v925, %v924
    %v928 = vrot.slane %v895, 4
    %vm929 = vcmask 1044484
    %v930 = vsel %vm929, %v928, %v927
    %v931 = vrot.slane %v897, 3
    %vm932 = vcmask 1045509
    %v933 = vsel %vm932, %v931, %v930
    %v934 = vrot.slane %v899, 2
    %vm935 = vcmask 1046534
    %v936 = vsel %vm935, %v934, %v933
    %v937 = vrot.slane %v901, 1
    %vm938 = vcmask 1047559
    %v939 = vsel %vm938, %v937, %v936
    %v940 = vrot.slane %v890, 7
    %v941 = vsel %vm920, %v940, %v888
    %v942 = vrot.slane %v892, 6
    %v943 = vsel %vm923, %v942, %v941
    %v944 = vrot.slane %v894, 5
    %v945 = vsel %vm926, %v944, %v943
    %v946 = vrot.slane %v896, 4
    %v947 = vsel %vm929, %v946, %v945
    %v948 = vrot.slane %v898, 3
    %v949 = vsel %vm932, %v948, %v947
    %v950 = vrot.slane %v900, 2
    %v951 = vsel %vm935, %v950, %v949
    %v952 = vrot.slane %v902, 1
    %v953 = vsel %vm938, %v952, %v951
    %956 = vst [vmem:[#allocation8] sm:$0xff] %v939
    %957 = vst [vmem:[#allocation8 + $0x8] sm:$0xff] %v953
    // Predicated region
    $region30: #{tpu_custom_call.1} parent=1 // pred_check
      _
    $region31: #{tpu_custom_call.1} parent=1 // pred_check_branch
      %959 = sbr.rel (0) target = $region33
    $region32: #{tpu_custom_call.1} parent=1 // pred_region
      %s961 = ssub.s32 256, 256
      %962 = vsyncadd [#allocation4], %s961
      %s964 = sshll.u32 [#allocation8], 4
      %s965 = int_to_ptr.vmem [resolvable:$true] %s964
      %967 = dma.vmem_to_hbm [thread:$0]  %s965, 256, %s4, [#allocation4]
    $region33: #{tpu_custom_call.1} parent=1 // pred_fallthru
      _
    // Predicated region
    $region34: #{tpu_custom_call.1} parent=1 // pred_check
      _
    $region35: #{tpu_custom_call.1} parent=1 // pred_check_branch
      %969 = sbr.rel (0) target = $region37
    $region36: #{tpu_custom_call.1} parent=1 // pred_region
      %970 = dma.done [#allocation4], 256
    $region37: #{tpu_custom_call.1} parent=1 // pred_fallthru
      _
    %971 = vsyncpa [#allocation3], 1
    %972 = vsyncpa [#allocation6], 1
    %973 = vsyncpa [#allocation4], 1

</llo_original>
